<compile_context>
chip_gen: v5e
topology: v5e:2x2
jax: 0.10.0
libtpu: 0.0.40
codegen_flags: <defaults>
</compile_context>

<pallas_src>
import functools

import jax
import jax.numpy as jnp
from jax import lax
from jax.experimental import pallas as pl
from jax.experimental.pallas import tpu as pltpu


def _ls_ce_kernel(x_ref, tgt_ref, out_ref, *, smoothing, n_rows, tile_n, chunk_c):
    """(tile_n, C) logits + (tile_n, 1) targets -> (8, 1) per-tile partial loss sum."""
    tgt = tgt_ref[...]                                  # (tile_n, 1) int32
    c = x_ref.shape[-1]
    inv_c = 1.0 / float(c)                              # compile-time constant
    confidence = 1.0 - smoothing

    # Single chunked pass over C with online LSE accumulators.  Per-chunk
    # temporaries are (tile_n, w) and die each iteration; the full (tile_n, C)
    # f32/exp/iota temporaries of the naive version never exist in VMEM.
    m = sumexp = s = x_t = None
    for off in range(0, c, chunk_c):
        w = min(chunk_c, c - off)                       # static tail width (no OOB)
        xc = x_ref[:, off:off + w]                      # (tile_n, w) native dtype
        xc32 = xc.astype(jnp.float32)
        cmax = jnp.max(xc, axis=-1, keepdims=True).astype(jnp.float32)  # exact in bf16
        # gather(dim=-1, index=target) as a one-hot masked sum; hoisted (1, w)
        # iota broadcast against the (tile_n, 1) target column.
        col = off + lax.broadcasted_iota(jnp.int32, (1, w), 1)
        xt_c = jnp.sum(jnp.where(col == tgt, xc32, 0.0), axis=-1, keepdims=True)
        s_c = jnp.sum(xc32, axis=-1, keepdims=True)     # f32 accumulation
        if m is None:                                   # first chunk: plain init
            m = cmax
            sumexp = jnp.sum(jnp.exp(xc32 - m), axis=-1, keepdims=True)
            s, x_t = s_c, xt_c
        else:                                           # online rescale + combine
            m_new = jnp.maximum(m, cmax)
            sumexp = sumexp * jnp.exp(m - m_new) + jnp.sum(
                jnp.exp(xc32 - m_new), axis=-1, keepdims=True)
            m = m_new
            s = s + s_c
            x_t = x_t + xt_c

    lse = jnp.log(sumexp)                               # (tile_n, 1)
    nll_loss = lse + m - x_t                            # -logprobs[target]
    smooth_loss = lse + m - s * inv_c                   # -mean(logprobs, axis=-1)
    loss = confidence * nll_loss + smoothing * smooth_loss

    # Mask padded remainder rows of the last tile, then reduce to a per-tile
    # partial sum (row 0 of an (8, 1) block) so writeback is tiny.
    row0 = pl.program_id(0) * tile_n
    row_ids = row0 + lax.broadcasted_iota(jnp.int32, (tile_n, 1), 0)
    loss = jnp.where(row_ids < n_rows, loss, 0.0)
    partial = jnp.sum(loss, axis=0, keepdims=True)      # (1, 1)
    sub = lax.broadcasted_iota(jnp.int32, (8, 1), 0)
    out_ref[...] = jnp.where(sub == 0, partial, 0.0)    # (8, 1); row 0 holds the sum


def _choose_tile_n(n, c, itemsize):
    # After the chunked-C restructure the per-step VMEM working set is dominated
    # by the double-buffered raw input tile (2 * tile_n * c * itemsize) plus a
    # few (tile_n, chunk) vreg-sized temporaries, so budget the raw tile at
    # ~8 MiB: 2x that stays well inside v7x's 64 MiB physical VMEM and leaves
    # plenty of headroom on 128 MiB v5e/v6e.
    tile_budget_bytes = 8 * 1024 * 1024
    per_row_bytes = max(1, c * itemsize)
    budget_rows = max(8, ((tile_budget_bytes // per_row_bytes) // 8) * 8)
    n8 = (n // 8) * 8                                   # largest multiple of 8 <= n
    if n8 == 0:
        return n                                        # tiny batch: single full block
    tile = int(min(1024, budget_rows, n8))
    # Prefer >= 2 grid steps so the "parallel" axis can shard across v7x's two
    # TensorCores and the DMA pipeline has something to overlap.
    if tile >= n and n >= 16:
        tile = max(8, ((n // 2) // 8) * 8)
    return tile


def _choose_chunk_c(c):
    # ~512-lane chunks keep per-chunk temporaries vreg-sized; cap the number of
    # statically-unrolled chunk iterations so trace/compile time stays bounded
    # for vocab-scale C.
    chunk = 512
    max_unrolled = 16
    if pl.cdiv(c, chunk) > max_unrolled:
        chunk = int(pl.cdiv(pl.cdiv(c, max_unrolled), 128)) * 128
    return int(min(chunk, c))


def _vmem_limit_bytes():
    # Generation-aware scoped-VMEM limit: ~0.7x physical capacity, capped.
    cap = 64 * 1024 * 1024                              # conservative default (v7x)
    try:
        info = pltpu.get_tpu_info()
        cap = int(getattr(info, "vmem_capacity_bytes", cap)) or cap
    except Exception:
        pass
    return int(min(int(cap * 0.7), 100 * 1024 * 1024))


def label_smoothing_cross_entropy(x, target, smoothing: float = 0.01):
    """x: (N, C) float logits (bf16 preferred — halves HBM traffic — or f32),
    target: (N,) integer class ids.  Returns a scalar f32 loss."""
    n, c = x.shape
    itemsize = jnp.dtype(x.dtype).itemsize
    tile_n = _choose_tile_n(n, c, itemsize)
    chunk_c = _choose_chunk_c(c)
    num_tiles = int(pl.cdiv(n, tile_n))

    tgt2d = target.astype(jnp.int32).reshape(n, 1)

    # TODO(synk): for vocab-scale C where even an 8-row (8, C) tile exceeds the
    # tile budget, add a reduction-last C grid axis ("arbitrary") with the same
    # online-LSE accumulators kept in VMEM scratch (init/finalize via pl.when).
    per_tile = pl.pallas_call(
        functools.partial(
            _ls_ce_kernel, smoothing=float(smoothing), n_rows=n,
            tile_n=tile_n, chunk_c=chunk_c),
        out_shape=jax.ShapeDtypeStruct((num_tiles * 8, 1), jnp.float32),
        grid=(num_tiles,),
        in_specs=[
            pl.BlockSpec((tile_n, c), lambda i: (i, 0)),
            pl.BlockSpec((tile_n, 1), lambda i: (i, 0)),
        ],
        out_specs=pl.BlockSpec((8, 1), lambda i: (i, 0)),
        compiler_params=pltpu.CompilerParams(
            dimension_semantics=("parallel",),
            vmem_limit_bytes=_vmem_limit_bytes(),
        ),
    )(x, tgt2d)

    # Tiny final reduction (num_tiles partial sums; padded slots are zero).
    return jnp.sum(per_tile) * (1.0 / n)


def _reference(x, target, smoothing=0.01):
    confidence = 1.0 - smoothing
    logprobs = jax.nn.log_softmax(x.astype(jnp.float32), axis=-1)
    nll = -jnp.take_along_axis(
        logprobs, target[:, None].astype(jnp.int32), axis=-1)[:, 0]
    smooth = -jnp.mean(logprobs, axis=-1)
    return jnp.mean(confidence * nll + smoothing * smooth)


if __name__ == "__main__":
    key = jax.random.PRNGKey(0)

    # (8, 128):  lane-aligned single-tile, single-chunk case.
    # (20, 200): multi-tile with remainder-row masking and non-128 C.
    # (16, 640): multi-tile AND multi-chunk (online-LSE combine path).
    # (32, 384) bf16: bf16 input path (native-dtype max/select, f32 accum).
    cases = [
        (8, 128, jnp.float32, 1e-5),
        (20, 200, jnp.float32, 1e-5),
        (16, 640, jnp.float32, 1e-5),
        (32, 384, jnp.bfloat16, 2e-3),
    ]
    for (n, c, dtype, tol) in cases:
        k1, k2, key = jax.random.split(key, 3)
        x = jax.random.normal(k1, (n, c), dtype=jnp.float32).astype(dtype)
        target = jax.random.randint(k2, (n,), 0, c, dtype=jnp.int32)

        loss = jax.block_until_ready(
            label_smoothing_cross_entropy(x, target, smoothing=0.01))
        ref = _reference(x, target, smoothing=0.01)
        assert jnp.allclose(loss, ref, atol=tol, rtol=tol), (n, c, dtype, loss, ref)

    print("KERNEL_OK")
</pallas_src>

<mosaic_0001>
module attributes {stable_mosaic.version = 11 : i64} {
  func.func @_ls_ce_kernel(%arg0: i32, %arg1: memref<8x128xf32, #tpu.memory_space<vmem>>, %arg2: memref<8x1xi32, #tpu.memory_space<vmem>>, %arg3: memref<8x1xf32, #tpu.memory_space<vmem>>) attributes {dimension_semantics = [#tpu.dimension_semantics<parallel>], iteration_bounds = array<i64: 1>, scalar_prefetch = 0 : i64, scratch_operands = 0 : i64, tpu.core_type = #tpu.core_type<tc>, window_params = [{transform_indices = @transform_0, window_bounds = array<i64: 8, 128>}, {transform_indices = @transform_1, window_bounds = array<i64: 8, 1>}, {transform_indices = @transform_2, window_bounds = array<i64: 8, 1>}]} {
    %c0 = arith.constant 0 : index
    %c0_0 = arith.constant 0 : index
    %0 = vector.load %arg2[%c0, %c0_0] : memref<8x1xi32, #tpu.memory_space<vmem>>, vector<8x1xi32>
    %c0_1 = arith.constant 0 : index
    %c0_2 = arith.constant 0 : index
    %1 = vector.load %arg1[%c0_1, %c0_2] : memref<8x128xf32, #tpu.memory_space<vmem>>, vector<8x128xf32>
    %cst = arith.constant dense<0xFF800000> : vector<8xf32>
    %2 = vector.multi_reduction <maximumf>, %1, %cst [1] : vector<8x128xf32> to vector<8xf32>
    %3 = vector.shape_cast %2 : vector<8xf32> to vector<8x1xf32>
    %4 = tpu.iota {dimensions = array<i32: 1>} : vector<1x128xi32>
    %c0_i32 = arith.constant 0 : i32
    %5 = vector.broadcast %c0_i32 : i32 to vector<1x128xi32>
    %6 = arith.addi %5, %4 : vector<1x128xi32>
    %7 = vector.broadcast %6 : vector<1x128xi32> to vector<8x128xi32>
    %8 = vector.broadcast %0 : vector<8x1xi32> to vector<8x128xi32>
    %9 = arith.cmpi eq, %7, %8 : vector<8x128xi32>
    %cst_3 = arith.constant 0.000000e+00 : f32
    %10 = vector.broadcast %cst_3 : f32 to vector<8x128xf32>
    %11 = arith.select %9, %1, %10 : vector<8x128xi1>, vector<8x128xf32>
    %cst_4 = arith.constant dense<0.000000e+00> : vector<8xf32>
    %12 = vector.multi_reduction <add>, %11, %cst_4 [1] : vector<8x128xf32> to vector<8xf32>
    %13 = vector.shape_cast %12 : vector<8xf32> to vector<8x1xf32>
    %cst_5 = arith.constant dense<0.000000e+00> : vector<8xf32>
    %14 = vector.multi_reduction <add>, %1, %cst_5 [1] : vector<8x128xf32> to vector<8xf32>
    %15 = vector.shape_cast %14 : vector<8xf32> to vector<8x1xf32>
    %16 = vector.broadcast %3 : vector<8x1xf32> to vector<8x128xf32>
    %17 = arith.subf %1, %16 : vector<8x128xf32>
    %18 = math.exp %17 : vector<8x128xf32>
    %cst_6 = arith.constant dense<0.000000e+00> : vector<8xf32>
    %19 = vector.multi_reduction <add>, %18, %cst_6 [1] : vector<8x128xf32> to vector<8xf32>
    %20 = vector.shape_cast %19 : vector<8xf32> to vector<8x1xf32>
    %21 = math.log %20 : vector<8x1xf32>
    %22 = arith.addf %21, %3 : vector<8x1xf32>
    %23 = arith.subf %22, %13 : vector<8x1xf32>
    %24 = arith.addf %21, %3 : vector<8x1xf32>
    %cst_7 = arith.constant 7.812500e-03 : f32
    %25 = vector.broadcast %cst_7 : f32 to vector<8x1xf32>
    %26 = arith.mulf %15, %25 : vector<8x1xf32>
    %27 = arith.subf %24, %26 : vector<8x1xf32>
    %cst_8 = arith.constant 9.900000e-01 : f32
    %28 = vector.broadcast %cst_8 : f32 to vector<8x1xf32>
    %29 = arith.mulf %28, %23 : vector<8x1xf32>
    %cst_9 = arith.constant 0.00999999977 : f32
    %30 = vector.broadcast %cst_9 : f32 to vector<8x1xf32>
    %31 = arith.mulf %30, %27 : vector<8x1xf32>
    %32 = arith.addf %29, %31 : vector<8x1xf32>
    %c8_i32 = arith.constant 8 : i32
    %33 = arith.muli %arg0, %c8_i32 : i32
    %34 = tpu.iota {dimensions = array<i32: 0>} : vector<8x1xi32>
    %35 = vector.broadcast %33 : i32 to vector<8x1xi32>
    %36 = arith.addi %35, %34 : vector<8x1xi32>
    %c8_i32_10 = arith.constant 8 : i32
    %37 = vector.broadcast %c8_i32_10 : i32 to vector<8x1xi32>
    %38 = arith.cmpi slt, %36, %37 : vector<8x1xi32>
    %cst_11 = arith.constant 0.000000e+00 : f32
    %39 = vector.broadcast %cst_11 : f32 to vector<8x1xf32>
    %40 = arith.select %38, %32, %39 : vector<8x1xi1>, vector<8x1xf32>
    %cst_12 = arith.constant dense<0.000000e+00> : vector<1xf32>
    %41 = vector.multi_reduction <add>, %40, %cst_12 [0] : vector<8x1xf32> to vector<1xf32>
    %42 = vector.shape_cast %41 : vector<1xf32> to vector<1x1xf32>
    %43 = tpu.iota {dimensions = array<i32: 0>} : vector<8x1xi32>
    %c0_i32_13 = arith.constant 0 : i32
    %44 = vector.broadcast %c0_i32_13 : i32 to vector<8x1xi32>
    %45 = arith.cmpi eq, %43, %44 : vector<8x1xi32>
    %cst_14 = arith.constant 0.000000e+00 : f32
    %46 = vector.shape_cast %42 : vector<1x1xf32> to vector<1x1xf32>
    %47 = vector.broadcast %46 : vector<1x1xf32> to vector<8x1xf32>
    %48 = vector.broadcast %cst_14 : f32 to vector<8x1xf32>
    %49 = arith.select %45, %47, %48 : vector<8x1xi1>, vector<8x1xf32>
    %c0_15 = arith.constant 0 : index
    %c0_16 = arith.constant 0 : index
    %50 = vector.load %arg3[%c0_15, %c0_16] : memref<8x1xf32, #tpu.memory_space<vmem>>, vector<8x1xf32>
    tpu.vector_store %arg3[%c0_15, %c0_16], %49 {strides = array<i32>} : memref<8x1xf32, #tpu.memory_space<vmem>>, vector<8x1xf32>,
    return
  }
  func.func @transform_0(%arg0: i32) -> (i32, i32) {
    %c0_i32 = arith.constant 0 : i32
    %c0_i32_0 = arith.constant 0 : i32
    return %arg0, %c0_i32 : i32, i32
  }
  func.func @transform_1(%arg0: i32) -> (i32, i32) {
    %c0_i32 = arith.constant 0 : i32
    %c0_i32_0 = arith.constant 0 : i32
    return %arg0, %c0_i32 : i32, i32
  }
  func.func @transform_2(%arg0: i32) -> (i32, i32) {
    %c0_i32 = arith.constant 0 : i32
    %c0_i32_0 = arith.constant 0 : i32
    return %arg0, %c0_i32 : i32, i32
  }
}

</mosaic_0001>

<llo_original>
// kernel: tpu_custom_call.1
$region0: #{tpu_custom_call.1}
  #allocation0 [shape = 'u32[]', space=smem, size = 0x4, offset = 0x4, fixed_abs, tag = 'smem constant byte address 0x4 - core index']
  #allocation1 [shape = 'u32[72,128]{1,0:T(1,128)}', space=vmem, size = 0x9000, scoped, tag = 'internal scratch']
  %s0 = inlined_call_operand.vmem [shape: f32[8,128], index: 0, kind: input, shape index: {}]
  %s1 = inlined_call_operand.vmem [shape: s32[8,1], index: 1, kind: input, shape index: {}]
  %s2 = inlined_call_operand.vmem [shape: f32[8,1], index: 2, kind: output, shape index: {}]
  %s3 = sld [smem:[#allocation0]]
  $region18: #{tpu_custom_call.1} parent=0
    _
  %s5 = ssub.s32 1, %s3
  %s6 = scalar_select 0, %s5, %s3
  // Predicated region
  $region2: #{tpu_custom_call.1} parent=0 // pred_check
    _
  $region3: #{tpu_custom_call.1} parent=0 // pred_check_branch
    %8 = sbr.rel (0) target = $region5
  $region4: #{tpu_custom_call.1} parent=0 // pred_region
    _
  $region5: #{tpu_custom_call.1} parent=0 // pred_fallthru
    _
  // Predicated region
  $region6: #{tpu_custom_call.1} parent=0 // pred_check
    _
  $region7: #{tpu_custom_call.1} parent=0 // pred_check_branch
    %10 = sbr.rel (0) target = $region9
  $region8: #{tpu_custom_call.1} parent=0 // pred_region
    _
  $region9: #{tpu_custom_call.1} parent=0 // pred_fallthru
    _
  %v11 = vld [vmem:[%s1] sm:$0xff]
  %v12 = vld [vmem:[%s0] sm:$0xff]
  %13 = vmax.xlane.f32.xlu0 %v12
  %v14 = vpop.xlane.xlu0 %13
  %v15 = vlaneseq
  %v16 = vand.u32 %v15, 127
  %17 = vset.pattern.permute.xlu0 0
  %18 = vperm.xlu0 %17, %v11
  %v19 = vpop.permute.xlu0 %18
  %vm20 = vcmp.eq.s32.totalorder %v16, %v19
  %v21 = vsel %vm20, %v12, 0.0
  %22 = vadd.xlane.f32.xlu0 %v21
  %v23 = vpop.xlane.xlu0 %22
  %24 = vadd.xlane.f32.xlu0 %v12
  %v25 = vpop.xlane.xlu0 %24
  %v26 = vsub.f32 %v12, %v14
  %v27 = vmul.f32 %v26, 1.442695
  %v28 = vpow.pop %v27
  %29 = vadd.xlane.f32.xlu0 %v28
  %v30 = vpop.xlane.xlu0 %29
  %v31 = vlog2.pop %v30
  %v32 = vmul.f32 %v31, 0.6931472
  %v33 = vadd.f32 %v32, %v14
  %v34 = vsub.f32 %v33, %v23
  %v35 = vmul.f32 %v25, 0.0078125
  %v36 = vsub.f32 %v33, %v35
  %v37 = vmul.f32 %v34, 0.99
  %v38 = vmul.f32 %v36, 0.01
  %v39 = vadd.f32 %v37, %v38
  %s40 = smul.u32 0, 8
  %v41 = vlaneseq
  %v42 = vshrl.u32 %v41, 7
  %v43 = vstv %s40
  %v44 = vadd.s32 %v43, %v42
  %vm45 = vcmp.lt.s32.totalorder %v44, 8
  %v46 = vsel %vm45, %v39, 0.0
  %v47 = vrot.slane %v46, 4
  %v48 = vadd.f32 %v46, %v47
  %v49 = vrot.slane %v48, 2
  %v50 = vadd.f32 %v48, %v49
  %v51 = vrot.slane %v50, 1
  %v52 = vadd.f32 %v50, %v51
  %vm53 = vcmp.eq.s32.totalorder %v42, 0
  %v54 = vsel %vm53, %v52, 0.0
  %vm55 = vcmask 7168
  %56 = vst.msk [vmem:[%s2] sm:$0xff] %vm55, %v54
  // Predicated region
  $region10: #{tpu_custom_call.1} parent=0 // pred_check
    _
  $region11: #{tpu_custom_call.1} parent=0 // pred_check_branch
    %58 = sbr.rel (0) target = $region13
  $region12: #{tpu_custom_call.1} parent=0 // pred_region
    _
  $region13: #{tpu_custom_call.1} parent=0 // pred_fallthru
    _
  // Predicated region
  $region14: #{tpu_custom_call.1} parent=0 // pred_check
    _
  $region15: #{tpu_custom_call.1} parent=0 // pred_check_branch
    %60 = sbr.rel (0) target = $region17
  $region16: #{tpu_custom_call.1} parent=0 // pred_region
    _
  $region17: #{tpu_custom_call.1} parent=0 // pred_fallthru
    _

</llo_original>
